<compile_context>
chip_gen: v5e
topology: v5e:2x2
jax: 0.10.0
libtpu: 0.0.40
codegen_flags: <defaults>
</compile_context>

<pallas_src>
import functools

import jax
import jax.numpy as jnp
from jax.experimental import pallas as pl
from jax.experimental.pallas import tpu as pltpu


# ------------------------------- kernels ----------------------------------- #

def _pool_excite_kernel(x_ref, w1_ref, b1_ref, w2_ref, b2_ref, scale_ref, acc_ref,
                        *, total_s, ts, acc_lane, n_chunks, inv_s):
    """Fused squeeze (mean over S) + excite (MLP -> sigmoid).

    x_ref:     (Bt, C, TS)        input tile, native dtype
    scale_ref: (Bt, C, 1) f32     output, resident across the S grid axis
    acc_ref:   (Bt, C, ACC_LANE)  f32 running partial sums (VPU-only inner loop)
    """
    si = pl.program_id(1)
    n_s = pl.num_programs(1)

    @pl.when(si == 0)
    def _():
        acc_ref[...] = jnp.zeros_like(acc_ref)

    x = x_ref[...]                                            # (Bt, C, TS)

    def accumulate(xv):
        if n_chunks == 0:
            # Single S step (TS == S, not a 128-multiple): one lane reduce total.
            acc_ref[...] += jnp.sum(xv, axis=-1, dtype=jnp.float32)[:, :, None]
        else:
            # Lane-aligned chunk adds keep the hot loop on the 4-slot VALU; the
            # XLU lane-reduce happens once per batch block in finalize().
            partial = xv[:, :, :acc_lane].astype(jnp.float32)
            for j in range(1, n_chunks):
                partial = partial + xv[:, :, j * acc_lane:(j + 1) * acc_lane
                                       ].astype(jnp.float32)
            acc_ref[...] += partial

    def finalize():
        pooled = jnp.sum(acc_ref[...], axis=-1, dtype=jnp.float32) * inv_s   # (Bt, C)
        h = jnp.dot(pooled, w1_ref[...], preferred_element_type=jnp.float32)
        h = jnp.maximum(h + b1_ref[...], 0.0)                                # (Bt, Cr)
        s = jnp.dot(h, w2_ref[...], preferred_element_type=jnp.float32)
        s = jax.nn.sigmoid(s + b2_ref[...])                                  # (Bt, C)
        scale_ref[...] = s[:, :, None]                                       # (Bt, C, 1)

    if total_s % ts == 0:
        accumulate(x)

        @pl.when(si == n_s - 1)
        def _():
            finalize()
    else:
        # Ragged last S tile: unmasked fast path for every step but the last,
        # so the iota/compare/select never touches the steady-state loop.
        @pl.when(si < n_s - 1)
        def _():
            accumulate(x)

        @pl.when(si == n_s - 1)
        def _():
            lane = jax.lax.broadcasted_iota(jnp.int32, x.shape, 2)
            accumulate(jnp.where(si * ts + lane < total_s, x, jnp.zeros_like(x)))
            finalize()


def _scale_kernel(x_ref, s_ref, o_ref):
    """out = x * scale, computed in x's native dtype.

    The sigmoid scale is cast down once per tile (for sub-f32 x this rounds
    slightly differently than multiplying in f32 and casting once at the end).
    For a ragged last S tile the out-of-bounds part of the input block holds
    padding garbage, but the matching out-of-bounds output writes are dropped
    by Pallas, so nothing out of bounds ever lands in the result.
    """
    o_ref[...] = x_ref[...] * s_ref[...].astype(o_ref.dtype)


# ------------------------------ tiling ------------------------------------- #

def _tpu_tuning():
    """Per-generation (block-size target, scoped-VMEM ceiling) in bytes."""
    try:
        kind = jax.devices()[0].device_kind.lower()
    except Exception:  # pragma: no cover - defensive
        kind = ""
    if "v7" in kind or "tpu7" in kind:
        # 64 MiB physical VMEM: ~2 MiB tiles, scoped limit capped at 48 MiB.
        return 2 << 20, 48 << 20
    if "v6" in kind or "v5" in kind:
        # 128 MiB physical VMEM: ~4 MiB tiles, allow up to 64 MiB scoped.
        return 4 << 20, 64 << 20
    # Unknown / older generations: stay conservative.
    return 1 << 20, 16 << 20


def _choose_tiles(B, C, S, itemsize, target_bytes, max_block_bytes):
    """Pick (Bt, TS): lane-dense blocks of ~target_bytes, TS a multiple of 128
    (or the full S), preferring a TS that divides S exactly (no ragged tile)."""
    target = max(min(target_bytes, max_block_bytes), C * 128 * itemsize)
    slab = C * S * itemsize                       # one batch element, flattened
    if slab <= target:
        ts = S                                    # full spatial extent per step
        bt = max(1, min(B, target // max(slab, 1)))
        while B % bt:                             # keep the batch grid exact
            bt -= 1
    else:
        bt = 1
        max_lanes = max(1, target // (C * itemsize * 128))    # in 128-lane units
        if S % 128 == 0:
            q = S // 128
            d = min(max_lanes, q)
            while q % d:                          # largest 128-multiple divisor of S
                d -= 1
            ts = 128 * d
        else:
            ts = 128 * min(max_lanes, max(1, S // 128))       # last tile is masked
    return bt, ts


# ------------------------------ wrapper ------------------------------------ #

def se_block_3d(x, w1, b1, w2, b2, *, donate_x=False):
    """x: (B, C, D, H, W). w1=(C,Cr)=fc1.weight.T, b1=(1,Cr), w2=(Cr,C)=fc2.weight.T, b2=(1,C)."""
    B, C, D, H, W = x.shape
    S = D * H * W
    Cr = w1.shape[1]
    x_flat = x.reshape(B, C, S)

    itemsize = jnp.dtype(x.dtype).itemsize
    target_bytes, vmem_cap = _tpu_tuning()
    # Keep the double-buffered footprint (pass 2: 2x in + 2x out blocks, plus
    # the pool accumulator and headroom) inside the scoped-VMEM ceiling.
    max_block_bytes = max((vmem_cap - (4 << 20)) // 6, 128 * 128 * itemsize)
    Bt, TS = _choose_tiles(B, C, S, itemsize, target_bytes, max_block_bytes)
    nB = B // Bt
    nS = pl.cdiv(S, TS)

    # Pool-accumulator geometry: up to 16 unrolled VPU chunk-adds per step.
    if TS % 128 == 0:
        q = TS // 128
        n_chunks = 1
        for d in range(min(16, q), 0, -1):
            if q % d == 0:
                n_chunks = d
                break
        acc_lane = TS // n_chunks
    else:                                          # TS == S -> single S step
        acc_lane, n_chunks = 1, 0

    block_bytes = Bt * C * TS * itemsize
    acc_bytes = Bt * C * acc_lane * 4
    weight_bytes = (C * Cr + Cr + Cr * C + C) * jnp.dtype(w1.dtype).itemsize
    vmem_limit = int(min(max(5 * block_bytes + acc_bytes + 2 * weight_bytes
                             + (2 << 20), 8 << 20), vmem_cap))

    # ---- pass 1: fused squeeze (channel means) + excite (MLP -> sigmoid) --- #
    # NOTE: on v7x with nB == 1 this pass runs on one TensorCore only; splitting
    # the S axis across cores (partial sums merged at the end) would recover up
    # to ~2x pooling bandwidth but would un-fuse the MLP finalize.
    scale = pl.pallas_call(
        functools.partial(_pool_excite_kernel, total_s=S, ts=TS,
                          acc_lane=acc_lane, n_chunks=n_chunks, inv_s=1.0 / S),
        out_shape=jax.ShapeDtypeStruct((B, C, 1), jnp.float32),
        grid_spec=pltpu.PrefetchScalarGridSpec(
            num_scalar_prefetch=0,
            grid=(nB, nS),
            in_specs=[
                pl.BlockSpec((Bt, C, TS), lambda b, s: (b, 0, s)),
                pl.BlockSpec((C, Cr), lambda b, s: (0, 0)),
                pl.BlockSpec((1, Cr), lambda b, s: (0, 0)),
                pl.BlockSpec((Cr, C), lambda b, s: (0, 0)),
                pl.BlockSpec((1, C), lambda b, s: (0, 0)),
            ],
            out_specs=pl.BlockSpec((Bt, C, 1), lambda b, s: (b, 0, 0)),
            scratch_shapes=[pltpu.VMEM((Bt, C, acc_lane), jnp.float32)],
        ),
        compiler_params=pltpu.CompilerParams(
            dimension_semantics=("parallel", "arbitrary"),
            vmem_limit_bytes=vmem_limit),
    )(x_flat, w1, b1, w2, b2)

    # ---- pass 2: apply the scale, streaming x again ------------------------ #
    out_flat = pl.pallas_call(
        _scale_kernel,
        out_shape=jax.ShapeDtypeStruct((B, C, S), x.dtype),
        grid_spec=pltpu.PrefetchScalarGridSpec(
            num_scalar_prefetch=0,
            grid=(nB, nS),
            in_specs=[
                pl.BlockSpec((Bt, C, TS), lambda b, s: (b, 0, s)),
                pl.BlockSpec((Bt, C, 1), lambda b, s: (b, 0, 0)),
            ],
            out_specs=pl.BlockSpec((Bt, C, TS), lambda b, s: (b, 0, s)),
        ),
        compiler_params=pltpu.CompilerParams(
            dimension_semantics=("parallel", "parallel"),
            vmem_limit_bytes=vmem_limit),
        input_output_aliases=({0: 0} if donate_x else {}),
    )(x_flat, scale)

    return out_flat.reshape(B, C, D, H, W)


def se_block_3d_ref(x, w1, b1, w2, b2):
    B, C = x.shape[:2]
    pooled = jnp.mean(x.reshape(B, C, -1), axis=-1)
    h = jnp.maximum(pooled @ w1 + b1, 0.0)
    s = jax.nn.sigmoid(h @ w2 + b2)
    return x * s.reshape(B, C, 1, 1, 1)


if __name__ == "__main__":
    # Small, SE-block-consistent shapes.
    B, C, D, H, W = 2, 32, 8, 8, 8
    reduction_ratio = 4
    Cr = C // reduction_ratio

    key = jax.random.PRNGKey(0)
    kx, kw1, kb1, kw2, kb2 = jax.random.split(key, 5)

    x = jax.random.normal(kx, (B, C, D, H, W), dtype=jnp.float32)
    # nn.Linear params, stored pre-transposed: w1 = fc1.weight.T, w2 = fc2.weight.T
    w1 = jax.random.normal(kw1, (C, Cr), dtype=jnp.float32) * 0.1
    b1 = jax.random.normal(kb1, (1, Cr), dtype=jnp.float32) * 0.1
    w2 = jax.random.normal(kw2, (Cr, C), dtype=jnp.float32) * 0.1
    b2 = jax.random.normal(kb2, (1, C), dtype=jnp.float32) * 0.1

    out = jax.block_until_ready(se_block_3d(x, w1, b1, w2, b2))

    ref = se_block_3d_ref(x, w1, b1[0], w2, b2[0])
    assert out.shape == x.shape and out.dtype == x.dtype
    assert jnp.allclose(out, ref, atol=1e-5, rtol=1e-5)

    print("KERNEL_OK")
</pallas_src>

<mosaic_0001>
module attributes {stable_mosaic.version = 11 : i64} {
  func.func @_pool_excite_kernel(%arg0: i32, %arg1: i32, %arg2: memref<2x32x512xf32, #tpu.memory_space<vmem>>, %arg3: memref<32x8xf32, #tpu.memory_space<vmem>>, %arg4: memref<1x8xf32, #tpu.memory_space<vmem>>, %arg5: memref<8x32xf32, #tpu.memory_space<vmem>>, %arg6: memref<1x32xf32, #tpu.memory_space<vmem>>, %arg7: memref<2x32x1xf32, #tpu.memory_space<vmem>>, %arg8: memref<2x32x128xf32, #tpu.memory_space<vmem>>) attributes {dimension_semantics = [#tpu.dimension_semantics<parallel>, #tpu.dimension_semantics<arbitrary>], iteration_bounds = array<i64: 1, 1>, scalar_prefetch = 0 : i64, scratch_operands = 1 : i64, tpu.core_type = #tpu.core_type<tc>, window_params = [{transform_indices = @transform_0, window_bounds = array<i64: 2, 32, 512>}, {pipeline_mode = #tpu.pipeline_mode<synchronous>, transform_indices = @transform_1, window_bounds = array<i64: 32, 8>}, {pipeline_mode = #tpu.pipeline_mode<synchronous>, transform_indices = @transform_2, window_bounds = array<i64: 1, 8>}, {pipeline_mode = #tpu.pipeline_mode<synchronous>, transform_indices = @transform_3, window_bounds = array<i64: 8, 32>}, {pipeline_mode = #tpu.pipeline_mode<synchronous>, transform_indices = @transform_4, window_bounds = array<i64: 1, 32>}, {transform_indices = @transform_5, window_bounds = array<i64: 2, 32, 1>}]} {
    %c0_i32 = arith.constant 0 : i32
    %0 = arith.cmpi eq, %arg1, %c0_i32 : i32
    %1 = arith.extui %0 : i1 to i32
    %c0_i32_0 = arith.constant 0 : i32
    %2 = arith.cmpi ne, %1, %c0_i32_0 : i32
    scf.if %2 {
      %cst = arith.constant 0.000000e+00 : f32
      %17 = vector.broadcast %cst : f32 to vector<2x32x128xf32>
      %c0_11 = arith.constant 0 : index
      %c0_12 = arith.constant 0 : index
      %c0_13 = arith.constant 0 : index
      %18 = vector.load %arg8[%c0_11, %c0_12, %c0_13] : memref<2x32x128xf32, #tpu.memory_space<vmem>>, vector<2x32x128xf32>
      tpu.vector_store %arg8[%c0_11, %c0_12, %c0_13], %17 {strides = array<i32>} : memref<2x32x128xf32, #tpu.memory_space<vmem>>, vector<2x32x128xf32>,
    } else {
    }
    %c0 = arith.constant 0 : index
    %c0_1 = arith.constant 0 : index
    %c0_2 = arith.constant 0 : index
    %3 = vector.load %arg2[%c0, %c0_1, %c0_2] : memref<2x32x512xf32, #tpu.memory_space<vmem>>, vector<2x32x512xf32>
    %4 = vector.extract_strided_slice %3 {offsets = [0, 0, 0], sizes = [2, 32, 128], strides = [1, 1, 1]} : vector<2x32x512xf32> to vector<2x32x128xf32>
    %5 = vector.extract_strided_slice %3 {offsets = [0, 0, 128], sizes = [2, 32, 128], strides = [1, 1, 1]} : vector<2x32x512xf32> to vector<2x32x128xf32>
    %6 = arith.addf %4, %5 : vector<2x32x128xf32>
    %7 = vector.extract_strided_slice %3 {offsets = [0, 0, 256], sizes = [2, 32, 128], strides = [1, 1, 1]} : vector<2x32x512xf32> to vector<2x32x128xf32>
    %8 = arith.addf %6, %7 : vector<2x32x128xf32>
    %9 = vector.extract_strided_slice %3 {offsets = [0, 0, 384], sizes = [2, 32, 128], strides = [1, 1, 1]} : vector<2x32x512xf32> to vector<2x32x128xf32>
    %10 = arith.addf %8, %9 : vector<2x32x128xf32>
    %c0_3 = arith.constant 0 : index
    %c0_4 = arith.constant 0 : index
    %c0_5 = arith.constant 0 : index
    %11 = vector.load %arg8[%c0_3, %c0_4, %c0_5] : memref<2x32x128xf32, #tpu.memory_space<vmem>>, vector<2x32x128xf32>
    %12 = arith.addf %11, %10 : vector<2x32x128xf32>
    %c0_6 = arith.constant 0 : index
    %c0_7 = arith.constant 0 : index
    %c0_8 = arith.constant 0 : index
    %13 = vector.load %arg8[%c0_6, %c0_7, %c0_8] : memref<2x32x128xf32, #tpu.memory_space<vmem>>, vector<2x32x128xf32>
    tpu.vector_store %arg8[%c0_6, %c0_7, %c0_8], %12 {strides = array<i32>} : memref<2x32x128xf32, #tpu.memory_space<vmem>>, vector<2x32x128xf32>,
    %c0_i32_9 = arith.constant 0 : i32
    %14 = arith.cmpi eq, %arg1, %c0_i32_9 : i32
    %15 = arith.extui %14 : i1 to i32
    %c0_i32_10 = arith.constant 0 : i32
    %16 = arith.cmpi ne, %15, %c0_i32_10 : i32
    scf.if %16 {
      %c0_11 = arith.constant 0 : index
      %c0_12 = arith.constant 0 : index
      %c0_13 = arith.constant 0 : index
      %17 = vector.load %arg8[%c0_11, %c0_12, %c0_13] : memref<2x32x128xf32, #tpu.memory_space<vmem>>, vector<2x32x128xf32>
      %cst = arith.constant dense<0.000000e+00> : vector<2x32xf32>
      %18 = vector.multi_reduction <add>, %17, %cst [2] : vector<2x32x128xf32> to vector<2x32xf32>
      %cst_14 = arith.constant 0.001953125 : f32
      %19 = vector.broadcast %cst_14 : f32 to vector<2x32xf32>
      %20 = arith.mulf %18, %19 : vector<2x32xf32>
      %c0_15 = arith.constant 0 : index
      %c0_16 = arith.constant 0 : index
      %21 = vector.load %arg3[%c0_15, %c0_16] : memref<32x8xf32, #tpu.memory_space<vmem>>, vector<32x8xf32>
      %cst_17 = arith.constant dense<0.000000e+00> : vector<2x8xf32>
      %22 = tpu.matmul %20, %21, %cst_17 {dimension_numbers = #tpu.dot_dimension_numbers<[1], [0], [0], [1], [0, 0, 1, 1], [], []>} : vector<2x32xf32>, vector<32x8xf32>, vector<2x8xf32> -> vector<2x8xf32>
      %c0_18 = arith.constant 0 : index
      %c0_19 = arith.constant 0 : index
      %23 = vector.load %arg4[%c0_18, %c0_19] : memref<1x8xf32, #tpu.memory_space<vmem>>, vector<1x8xf32>
      %24 = vector.broadcast %23 : vector<1x8xf32> to vector<2x8xf32>
      %25 = arith.addf %22, %24 : vector<2x8xf32>
      %cst_20 = arith.constant 0.000000e+00 : f32
      %26 = vector.broadcast %cst_20 : f32 to vector<2x8xf32>
      %27 = arith.maximumf %25, %26 : vector<2x8xf32>
      %c0_21 = arith.constant 0 : index
      %c0_22 = arith.constant 0 : index
      %28 = vector.load %arg5[%c0_21, %c0_22] : memref<8x32xf32, #tpu.memory_space<vmem>>, vector<8x32xf32>
      %cst_23 = arith.constant dense<0.000000e+00> : vector<2x32xf32>
      %29 = tpu.matmul %27, %28, %cst_23 {dimension_numbers = #tpu.dot_dimension_numbers<[1], [0], [0], [1], [0, 0, 1, 1], [], []>} : vector<2x8xf32>, vector<8x32xf32>, vector<2x32xf32> -> vector<2x32xf32>
      %c0_24 = arith.constant 0 : index
      %c0_25 = arith.constant 0 : index
      %30 = vector.load %arg6[%c0_24, %c0_25] : memref<1x32xf32, #tpu.memory_space<vmem>>, vector<1x32xf32>
      %31 = vector.broadcast %30 : vector<1x32xf32> to vector<2x32xf32>
      %32 = arith.addf %29, %31 : vector<2x32xf32>
      %33 = arith.negf %32 : vector<2x32xf32>
      %34 = math.exp %33 : vector<2x32xf32>
      %cst_26 = arith.constant 1.000000e+00 : f32
      %35 = vector.broadcast %cst_26 : f32 to vector<2x32xf32>
      %36 = arith.addf %35, %34 : vector<2x32xf32>
      %37 = arith.divf %35, %36 : vector<2x32xf32>
      %38 = vector.shape_cast %37 : vector<2x32xf32> to vector<2x32x1xf32>
      %c0_27 = arith.constant 0 : index
      %c0_28 = arith.constant 0 : index
      %c0_29 = arith.constant 0 : index
      %39 = vector.load %arg7[%c0_27, %c0_28, %c0_29] : memref<2x32x1xf32, #tpu.memory_space<vmem>>, vector<2x32x1xf32>
      tpu.vector_store %arg7[%c0_27, %c0_28, %c0_29], %38 {strides = array<i32>} : memref<2x32x1xf32, #tpu.memory_space<vmem>>, vector<2x32x1xf32>,
    } else {
    }
    return
  }
  func.func @transform_0(%arg0: i32, %arg1: i32) -> (i32, i32, i32) {
    %c0_i32 = arith.constant 0 : i32
    %c0_i32_0 = arith.constant 0 : i32
    return %arg0, %c0_i32, %arg1 : i32, i32, i32
  }
  func.func @transform_1(%arg0: i32, %arg1: i32) -> (i32, i32) {
    %c0_i32 = arith.constant 0 : i32
    %c0_i32_0 = arith.constant 0 : i32
    %c0_i32_1 = arith.constant 0 : i32
    return %c0_i32, %c0_i32_0 : i32, i32
  }
  func.func @transform_2(%arg0: i32, %arg1: i32) -> (i32, i32) {
    %c0_i32 = arith.constant 0 : i32
    %c0_i32_0 = arith.constant 0 : i32
    %c0_i32_1 = arith.constant 0 : i32
    return %c0_i32, %c0_i32_0 : i32, i32
  }
  func.func @transform_3(%arg0: i32, %arg1: i32) -> (i32, i32) {
    %c0_i32 = arith.constant 0 : i32
    %c0_i32_0 = arith.constant 0 : i32
    %c0_i32_1 = arith.constant 0 : i32
    return %c0_i32, %c0_i32_0 : i32, i32
  }
  func.func @transform_4(%arg0: i32, %arg1: i32) -> (i32, i32) {
    %c0_i32 = arith.constant 0 : i32
    %c0_i32_0 = arith.constant 0 : i32
    %c0_i32_1 = arith.constant 0 : i32
    return %c0_i32, %c0_i32_0 : i32, i32
  }
  func.func @transform_5(%arg0: i32, %arg1: i32) -> (i32, i32, i32) {
    %c0_i32 = arith.constant 0 : i32
    %c0_i32_0 = arith.constant 0 : i32
    %c0_i32_1 = arith.constant 0 : i32
    return %arg0, %c0_i32, %c0_i32_0 : i32, i32, i32
  }
}

</mosaic_0001>

<llo_original>
// kernel: tpu_custom_call.1
$region0: #{tpu_custom_call.1}
  #allocation0 [shape = 'u32[]', space=smem, size = 0x4, offset = 0x4, fixed_abs, tag = 'smem constant byte address 0x4 - core index']
  #allocation1 [shape = 'u32[72,128]{1,0:T(1,128)}', space=vmem, size = 0x9000, scoped, tag = 'internal scratch']
  #allocation2 [shape = 'f32[2,32,128]{2,1,0:T(8,128)}', space=vmem, size = 0x8000, scoped, tag = 'scratch operand']
  %s0 = inlined_call_operand.hbm [shape: f32[2,32,512], index: 0, kind: input, shape index: {}]
  %s1 = inlined_call_operand.vmem [shape: f32[32,8], index: 1, kind: input, shape index: {}]
  %s2 = inlined_call_operand.vmem [shape: f32[1,8], index: 2, kind: input, shape index: {}]
  %s3 = inlined_call_operand.vmem [shape: f32[8,32], index: 3, kind: input, shape index: {}]
  %s4 = inlined_call_operand.vmem [shape: f32[1,32], index: 4, kind: input, shape index: {}]
  %s5 = inlined_call_operand.vmem [shape: f32[2,32,1], index: 5, kind: output, shape index: {}]
  %s6 = sld [smem:[#allocation0]]
  $region42: #{tpu_custom_call.1} parent=0
    _
  %s8 = ssub.s32 1, %s6
  %s9 = scalar_select 0, %s8, %s6
  $region1: #{tpu_custom_call.1} parent=0
    #allocation3 [shape = 'u8[131072]{0}', space=vmem, size = 0x20000, scoped, tag = 'input window, operand 0, single buffered']
    #allocation4 [shape = 's32[1]{0}', space=sflag, size = 0x4, scoped, tag = 'scoped memory for tpu_custom_call.1']
    %10 = vsyncpa [#allocation4], 0
    // Predicated region
    $region2: #{tpu_custom_call.1} parent=1 // pred_check
      _
    $region3: #{tpu_custom_call.1} parent=1 // pred_check_branch
      %12 = sbr.rel (0) target = $region5
    $region4: #{tpu_custom_call.1} parent=1 // pred_region
      %14 = vsyncadd [#allocation4], 0
      %s15 = sshll.u32 %s0, 4
      %s16 = int_to_ptr.hbm [resolvable:$true] %s15
      %s17 = sshll.u32 [#allocation3], 4
      %s18 = int_to_ptr.vmem [resolvable:$true] %s17
      %23 = dma.hbm_to_vmem [thread:$0]  %s16, 4096, %s18, [#allocation4], 512, 512, 32
    $region5: #{tpu_custom_call.1} parent=1 // pred_fallthru
      _
    // Predicated region
    $region6: #{tpu_custom_call.1} parent=1 // pred_check
      _
    $region7: #{tpu_custom_call.1} parent=1 // pred_check_branch
      %25 = sbr.rel (0) target = $region9
    $region8: #{tpu_custom_call.1} parent=1 // pred_region
      _
    $region9: #{tpu_custom_call.1} parent=1 // pred_fallthru
      _
    // Predicated region
    $region10: #{tpu_custom_call.1} parent=1 // pred_check
      _
    $region11: #{tpu_custom_call.1} parent=1 // pred_check_branch
      %27 = sbr.rel (0) target = $region13
    $region12: #{tpu_custom_call.1} parent=1 // pred_region
      _
    $region13: #{tpu_custom_call.1} parent=1 // pred_fallthru
      _
    // Predicated region
    $region14: #{tpu_custom_call.1} parent=1 // pred_check
      _
    $region15: #{tpu_custom_call.1} parent=1 // pred_check_branch
      %29 = sbr.rel (0) target = $region17
    $region16: #{tpu_custom_call.1} parent=1 // pred_region
      _
    $region17: #{tpu_custom_call.1} parent=1 // pred_fallthru
      _
    // Predicated region
    $region18: #{tpu_custom_call.1} parent=1 // pred_check
      _
    $region19: #{tpu_custom_call.1} parent=1 // pred_check_branch
      %31 = sbr.rel (0) target = $region21
    $region20: #{tpu_custom_call.1} parent=1 // pred_region
      _
    $region21: #{tpu_custom_call.1} parent=1 // pred_fallthru
      _
    // Predicated region
    $region22: #{tpu_custom_call.1} parent=1 // pred_check
      _
    $region23: #{tpu_custom_call.1} parent=1 // pred_check_branch
      %33 = sbr.rel (0) target = $region25
    $region24: #{tpu_custom_call.1} parent=1 // pred_region
      %35 = dma.done [#allocation4], 4096
    $region25: #{tpu_custom_call.1} parent=1 // pred_fallthru
      _
    %p36 = scmp.eq.s32.totalorder 0, 0
    // Predicated region
    $region26: #{tpu_custom_call.1} parent=1 // pred_check
      %p37 = pneg %p36
    $region27: #{tpu_custom_call.1} parent=1 // pred_check_branch
      %39 = sbr.rel (%p37) target = $region29
    $region28: #{tpu_custom_call.1} parent=1 // pred_region
      %40 = vst [vmem:[#allocation2] sm:$0xff] 0.0
      %41 = vst [vmem:[#allocation2 + $0x8] sm:$0xff] 0.0
      %42 = vst [vmem:[#allocation2 + $0x10] sm:$0xff] 0.0
      %43 = vst [vmem:[#allocation2 + $0x18] sm:$0xff] 0.0
      %44 = vst [vmem:[#allocation2 + $0x20] sm:$0xff] 0.0
      %45 = vst [vmem:[#allocation2 + $0x28] sm:$0xff] 0.0
      %46 = vst [vmem:[#allocation2 + $0x30] sm:$0xff] 0.0
      %47 = vst [vmem:[#allocation2 + $0x38] sm:$0xff] 0.0
    $region29: #{tpu_custom_call.1} parent=1 // pred_fallthru
      _
    %v48 = vld [vmem:[#allocation3] sm:$0xff]
    %v49 = vld [vmem:[#allocation3 + $0x8] sm:$0xff]
    %v50 = vld [vmem:[#allocation3 + $0x10] sm:$0xff]
    %v51 = vld [vmem:[#allocation3 + $0x18] sm:$0xff]
    %v52 = vld [vmem:[#allocation3 + $0x20] sm:$0xff]
    %v53 = vld [vmem:[#allocation3 + $0x28] sm:$0xff]
    %v54 = vld [vmem:[#allocation3 + $0x30] sm:$0xff]
    %v55 = vld [vmem:[#allocation3 + $0x38] sm:$0xff]
    %v56 = vld [vmem:[#allocation3 + $0x40] sm:$0xff]
    %v57 = vld [vmem:[#allocation3 + $0x48] sm:$0xff]
    %v58 = vld [vmem:[#allocation3 + $0x50] sm:$0xff]
    %v59 = vld [vmem:[#allocation3 + $0x58] sm:$0xff]
    %v60 = vld [vmem:[#allocation3 + $0x60] sm:$0xff]
    %v61 = vld [vmem:[#allocation3 + $0x68] sm:$0xff]
    %v62 = vld [vmem:[#allocation3 + $0x70] sm:$0xff]
    %v63 = vld [vmem:[#allocation3 + $0x78] sm:$0xff]
    %v64 = vld [vmem:[#allocation3 + $0x80] sm:$0xff]
    %v65 = vld [vmem:[#allocation3 + $0x88] sm:$0xff]
    %v66 = vld [vmem:[#allocation3 + $0x90] sm:$0xff]
    %v67 = vld [vmem:[#allocation3 + $0x98] sm:$0xff]
    %v68 = vld [vmem:[#allocation3 + $0xa0] sm:$0xff]
    %v69 = vld [vmem:[#allocation3 + $0xa8] sm:$0xff]
    %v70 = vld [vmem:[#allocation3 + $0xb0] sm:$0xff]
    %v71 = vld [vmem:[#allocation3 + $0xb8] sm:$0xff]
    %v72 = vld [vmem:[#allocation3 + $0xc0] sm:$0xff]
    %v73 = vld [vmem:[#allocation3 + $0xc8] sm:$0xff]
    %v74 = vld [vmem:[#allocation3 + $0xd0] sm:$0xff]
    %v75 = vld [vmem:[#allocation3 + $0xd8] sm:$0xff]
    %v76 = vld [vmem:[#allocation3 + $0xe0] sm:$0xff]
    %v77 = vld [vmem:[#allocation3 + $0xe8] sm:$0xff]
    %v78 = vld [vmem:[#allocation3 + $0xf0] sm:$0xff]
    %v79 = vld [vmem:[#allocation3 + $0xf8] sm:$0xff]
    %v80 = vadd.f32 %v48, %v49
    %v81 = vadd.f32 %v52, %v53
    %v82 = vadd.f32 %v56, %v57
    %v83 = vadd.f32 %v60, %v61
    %v84 = vadd.f32 %v64, %v65
    %v85 = vadd.f32 %v68, %v69
    %v86 = vadd.f32 %v72, %v73
    %v87 = vadd.f32 %v76, %v77
    %v88 = vadd.f32 %v80, %v50
    %v89 = vadd.f32 %v81, %v54
    %v90 = vadd.f32 %v82, %v58
    %v91 = vadd.f32 %v83, %v62
    %v92 = vadd.f32 %v84, %v66
    %v93 = vadd.f32 %v85, %v70
    %v94 = vadd.f32 %v86, %v74
    %v95 = vadd.f32 %v87, %v78
    %v96 = vadd.f32 %v88, %v51
    %v97 = vadd.f32 %v89, %v55
    %v98 = vadd.f32 %v90, %v59
    %v99 = vadd.f32 %v91, %v63
    %v100 = vadd.f32 %v92, %v67
    %v101 = vadd.f32 %v93, %v71
    %v102 = vadd.f32 %v94, %v75
    %v103 = vadd.f32 %v95, %v79
    %v104 = vld [vmem:[#allocation2] sm:$0xff]
    %v105 = vld [vmem:[#allocation2 + $0x8] sm:$0xff]
    %v106 = vld [vmem:[#allocation2 + $0x10] sm:$0xff]
    %v107 = vld [vmem:[#allocation2 + $0x18] sm:$0xff]
    %v108 = vld [vmem:[#allocation2 + $0x20] sm:$0xff]
    %v109 = vld [vmem:[#allocation2 + $0x28] sm:$0xff]
    %v110 = vld [vmem:[#allocation2 + $0x30] sm:$0xff]
    %v111 = vld [vmem:[#allocation2 + $0x38] sm:$0xff]
    %v112 = vadd.f32 %v104, %v96
    %v113 = vadd.f32 %v105, %v97
    %v114 = vadd.f32 %v106, %v98
    %v115 = vadd.f32 %v107, %v99
    %v116 = vadd.f32 %v108, %v100
    %v117 = vadd.f32 %v109, %v101
    %v118 = vadd.f32 %v110, %v102
    %v119 = vadd.f32 %v111, %v103
    %120 = vst [vmem:[#allocation2] sm:$0xff] %v112
    %121 = vst [vmem:[#allocation2 + $0x8] sm:$0xff] %v113
    %122 = vst [vmem:[#allocation2 + $0x10] sm:$0xff] %v114
    %123 = vst [vmem:[#allocation2 + $0x18] sm:$0xff] %v115
    %124 = vst [vmem:[#allocation2 + $0x20] sm:$0xff] %v116
    %125 = vst [vmem:[#allocation2 + $0x28] sm:$0xff] %v117
    %126 = vst [vmem:[#allocation2 + $0x30] sm:$0xff] %v118
    %127 = vst [vmem:[#allocation2 + $0x38] sm:$0xff] %v119
    // Predicated region
    $region30: #{tpu_custom_call.1} parent=1 // pred_check
      %p128 = pneg %p36
    $region31: #{tpu_custom_call.1} parent=1 // pred_check_branch
      %130 = sbr.rel (%p128) target = $region33
    $region32: #{tpu_custom_call.1} parent=1 // pred_region
      %v131 = vld [vmem:[#allocation2] sm:$0xff]
      %v132 = vld [vmem:[#allocation2 + $0x8] sm:$0xff]
      %v133 = vld [vmem:[#allocation2 + $0x10] sm:$0xff]
      %v134 = vld [vmem:[#allocation2 + $0x18] sm:$0xff]
      %v135 = vld [vmem:[#allocation2 + $0x20] sm:$0xff]
      %v136 = vld [vmem:[#allocation2 + $0x28] sm:$0xff]
      %v137 = vld [vmem:[#allocation2 + $0x30] sm:$0xff]
      %v138 = vld [vmem:[#allocation2 + $0x38] sm:$0xff]
      %139 = vadd.xlane.f32.xlu0 %v131
      %v140 = vpop.xlane.xlu0 %139
      %141 = vadd.xlane.f32.xlu0 %v132
      %v142 = vpop.xlane.xlu0 %141
      %143 = vadd.xlane.f32.xlu0 %v133
      %v144 = vpop.xlane.xlu0 %143
      %145 = vadd.xlane.f32.xlu0 %v134
      %v146 = vpop.xlane.xlu0 %145
      %147 = vadd.xlane.f32.xlu0 %v135
      %v148 = vpop.xlane.xlu0 %147
      %149 = vadd.xlane.f32.xlu0 %v136
      %v150 = vpop.xlane.xlu0 %149
      %151 = vadd.xlane.f32.xlu0 %v137
      %v152 = vpop.xlane.xlu0 %151
      %153 = vadd.xlane.f32.xlu0 %v138
      %v154 = vpop.xlane.xlu0 %153
      %v155 = vmul.f32 %v140, 0.001953125
      %v156 = vmul.f32 %v142, 0.001953125
      %v157 = vmul.f32 %v144, 0.001953125
      %v158 = vmul.f32 %v146, 0.001953125
      %v159 = vmul.f32 %v148, 0.001953125
      %v160 = vmul.f32 %v150, 0.001953125
      %v161 = vmul.f32 %v152, 0.001953125
      %v162 = vmul.f32 %v154, 0.001953125
      %v163 = vld [vmem:[%s1] sm:$0xff]
      %v164 = vld [vmem:[%s1 + $0x8] sm:$0xff]
      %v165 = vld [vmem:[%s1 + $0x10] sm:$0xff]
      %v166 = vld [vmem:[%s1 + $0x18] sm:$0xff]
      %v167 = vld [vmem:[%s2] sm:$0x1]
      %v169 = vperm.slane %v167, 0
      %v179 = vlaneseq
      %v180 = vand.u32 %v179, 127
      %v181 = vperm.slane %v155, %v180
      %v182 = vadd.s32 %v180, 4294967288
      %v183 = vperm.slane %v156, %v182
      %vm184 = vcmask 130112
      %v185 = vsel %vm184, %v183, %v181
      %v186 = vadd.s32 %v180, 4294967280
      %v187 = vperm.slane %v157, %v186
      %vm188 = vcmask 195712
      %v189 = vsel %vm188, %v187, %v185
      %v190 = vadd.s32 %v180, 4294967272
      %v191 = vperm.slane %v158, %v190
      %vm192 = vcmask 261312
      %v193 = vsel %vm192, %v191, %v189
      %v194 = vperm.slane %v159, %v180
      %v195 = vperm.slane %v160, %v182
      %v196 = vsel %vm184, %v195, %v194
      %v197 = vperm.slane %v161, %v186
      %v198 = vsel %vm188, %v197, %v196
      %v199 = vperm.slane %v162, %v190
      %v200 = vsel %vm192, %v199, %v198
      %vm201 = vcmask 1041409
      %v202 = vsel %vm201, %v200, %v193
      %vm203 = vcmask 261120
      %v204 = vsel %vm203, %v202, 0
      %206 = vmatpush.msra.mxu0 0.0
      %207 = vmatpush.msra.mxu0 0.0
      %208 = vmatpush.msra.mxu0 0.0
      %209 = vmatpush.msra.mxu0 0.0
      %210 = vmatpush.msra.mxu0 0.0
      %211 = vmatpush.msra.mxu0 0.0
      %212 = vmatpush.msra.mxu0 0.0
      %213 = vmatpush.msra.mxu0 0.0
      %214 = vmatpush.msra.mxu0 0.0
      %215 = vmatpush.msra.mxu0 0.0
      %216 = vmatpush.msra.mxu0 0.0
      %217 = vmatpush.msra.mxu0 0.0
      %218 = vmatpush.msra.mxu0 %v166
      %219 = vmatpush.msra.mxu0 %v165
      %220 = vmatpush.msra.mxu0 %v164
      %221 = vmatpush.msra.mxu0 %v163
      %222 = vmatmul.f32.gmra.mxu0 %v204
      %v223 = vpop.f32.mrf.mxu0
      %v224 = vadd.f32 %v169, %v223
      %225 = vdwg.mxu0
      %v226 = vmax.f32 %v224, 0.0
      %v227 = vld [vmem:[%s3] sm:$0xff]
      %v228 = vld [vmem:[%s4] sm:$0x1]
      %v230 = vperm.slane %v228, 0
      %vm232 = vcmask 64512
      %v234 = vsel %vm232, %v226, 0
      %236 = vmatpush.msra.mxu0 0.0
      %237 = vmatpush.msra.mxu0 0.0
      %238 = vmatpush.msra.mxu0 0.0
      %239 = vmatpush.msra.mxu0 0.0
      %240 = vmatpush.msra.mxu0 0.0
      %241 = vmatpush.msra.mxu0 0.0
      %242 = vmatpush.msra.mxu0 0.0
      %243 = vmatpush.msra.mxu0 0.0
      %244 = vmatpush.msra.mxu0 0.0
      %245 = vmatpush.msra.mxu0 0.0
      %246 = vmatpush.msra.mxu0 0.0
      %247 = vmatpush.msra.mxu0 0.0
      %248 = vmatpush.msra.mxu0 0.0
      %249 = vmatpush.msra.mxu0 0.0
      %250 = vmatpush.msra.mxu0 0.0
      %251 = vmatpush.msra.mxu0 %v227
      %252 = vmatmul.f32.gmra.mxu0 %v234
      %v253 = vpop.f32.mrf.mxu0
      %v254 = vadd.f32 %v230, %v253
      %255 = vdwg.mxu0
      %v256 = vxor.u32 %v254, 2147483648
      %v257 = vmul.f32 %v256, 1.442695
      %v258 = vpow.pop %v257
      %v259 = vadd.f32 %v258, 1.0
      %v260 = vrcp.pop %v259
      %v261 = vmul.f32 %v259, %v260
      %v262 = vsub.f32 1.0, %v261
      %v263 = vmul.f32 %v260, %v262
      %v264 = vadd.f32 %v260, %v263
      %vm265 = vweird.f32 %v259
      %vm266 = vweird.f32 %v260
      %vm267 = vmor %vm265, %vm266
      %v268 = vsel %vm267, %v260, %v264
      %v269 = vand.u32 2147483647, %v259
      %vm270 = vcmp.eq.f32.partialorder %v269, 8.507059e+37
      %v271 = vand.u32 %v259, 2147483648
      %v272 = vor.u32 1.1754944e-38, %v271
      %v273 = vsel %vm270, %v272, %v268
      %v274 = vmul.f32 1.0, %v273
      %v275 = vperm.slane %v274, 0
      %v276 = vlaneseq
      %v277 = vshrl.u32 %v276, 7
      %279 = vset.pattern.permute.xlu0 %v277
      %280 = vperm.xlu0 %279, %v275
      %v281 = vpop.permute.xlu0 %280
      %v282 = vlaneseq
      %v283 = vshrl.u32 %v282, 7
      %v284 = vadd.s32 %v283, 8
      %285 = vset.pattern.permute.xlu0 %v284
      %286 = vperm.xlu0 %285, %v275
      %v287 = vpop.permute.xlu0 %286
      %v288 = vlaneseq
      %v289 = vshrl.u32 %v288, 7
      %v290 = vadd.s32 %v289, 16
      %291 = vset.pattern.permute.xlu0 %v290
      %292 = vperm.xlu0 %291, %v275
      %v293 = vpop.permute.xlu0 %292
      %v294 = vlaneseq
      %v295 = vshrl.u32 %v294, 7
      %v296 = vadd.s32 %v295, 24
      %297 = vset.pattern.permute.xlu0 %v296
      %298 = vperm.xlu0 %297, %v275
      %v299 = vpop.permute.xlu0 %298
      %v300 = vperm.slane %v274, 1
      %v301 = vlaneseq
      %v302 = vshrl.u32 %v301, 7
      %304 = vset.pattern.permute.xlu0 %v302
      %305 = vperm.xlu0 %304, %v300
      %v306 = vpop.permute.xlu0 %305
      %v307 = vlaneseq
      %v308 = vshrl.u32 %v307, 7
      %v309 = vadd.s32 %v308, 8
      %310 = vset.pattern.permute.xlu0 %v309
      %311 = vperm.xlu0 %310, %v300
      %v312 = vpop.permute.xlu0 %311
      %v313 = vlaneseq
      %v314 = vshrl.u32 %v313, 7
      %v315 = vadd.s32 %v314, 16
      %316 = vset.pattern.permute.xlu0 %v315
      %317 = vperm.xlu0 %316, %v300
      %v318 = vpop.permute.xlu0 %317
      %v319 = vlaneseq
      %v320 = vshrl.u32 %v319, 7
      %v321 = vadd.s32 %v320, 24
      %322 = vset.pattern.permute.xlu0 %v321
      %323 = vperm.xlu0 %322, %v300
      %v324 = vpop.permute.xlu0 %323
      %vm325 = vcmask 7168
      %326 = vst.msk [vmem:[%s5] sm:$0xff] %vm325, %v281
      %327 = vst.msk [vmem:[%s5 + $0x8] sm:$0xff] %vm325, %v287
      %328 = vst.msk [vmem:[%s5 + $0x10] sm:$0xff] %vm325, %v293
      %329 = vst.msk [vmem:[%s5 + $0x18] sm:$0xff] %vm325, %v299
      %330 = vst.msk [vmem:[%s5 + $0x20] sm:$0xff] %vm325, %v306
      %331 = vst.msk [vmem:[%s5 + $0x28] sm:$0xff] %vm325, %v312
      %332 = vst.msk [vmem:[%s5 + $0x30] sm:$0xff] %vm325, %v318
      %333 = vst.msk [vmem:[%s5 + $0x38] sm:$0xff] %vm325, %v324
    $region33: #{tpu_custom_call.1} parent=1 // pred_fallthru
      _
    // Predicated region
    $region34: #{tpu_custom_call.1} parent=1 // pred_check
      _
    $region35: #{tpu_custom_call.1} parent=1 // pred_check_branch
      %335 = sbr.rel (0) target = $region37
    $region36: #{tpu_custom_call.1} parent=1 // pred_region
      _
    $region37: #{tpu_custom_call.1} parent=1 // pred_fallthru
      _
    // Predicated region
    $region38: #{tpu_custom_call.1} parent=1 // pred_check
      _
    $region39: #{tpu_custom_call.1} parent=1 // pred_check_branch
      %337 = sbr.rel (0) target = $region41
    $region40: #{tpu_custom_call.1} parent=1 // pred_region
      _
    $region41: #{tpu_custom_call.1} parent=1 // pred_fallthru
      _
    %338 = vsyncpa [#allocation4], 1

</llo_original>
